<compile_context>
chip_gen: v7x
topology: tpu7x:2x2x1
jax: 0.10.0
libtpu: 0.0.40
codegen_flags: <defaults>
</compile_context>

<pallas_src>
import jax
import jax.numpy as jnp
from jax.experimental import pallas as pl
from jax.experimental.pallas import tpu as pltpu


def _round_up(n: int, m: int) -> int:
    return ((n + m - 1) // m) * m


def _linear_ae_kernel(x_ref, w_enc_ref, w_dec_ref, b_ref, o_ref, code_ref):
    # Encoder runs once per batch tile (innermost grid axis j == 0); its
    # result is cached in VMEM scratch and reused for every decoder tile j.
    @pl.when(pl.program_id(1) == 0)
    def _():
        code = jnp.dot(x_ref[...], w_enc_ref[...],
                       preferred_element_type=jnp.float32)
        code_ref[...] = code.astype(code_ref.dtype)

    # Decoder tile: (TB, d_code) @ (d_code, TN) + (1, TN), f32 accumulation.
    out = jnp.dot(code_ref[...], w_dec_ref[...],
                  preferred_element_type=jnp.float32) + b_ref[...]
    o_ref[...] = out.astype(o_ref.dtype)


def linear_ae(x, w_enc, b_enc, w_dec, b_dec):
    """dec(enc(x)).

    x:     (B, d_in)
    w_enc: (d_in, d_code)   (= PyTorch enc.weight.T)
    b_enc: (d_code,) or (1, d_code)
    w_dec: (d_code, d_in)   (= PyTorch dec.weight.T)
    b_dec: (d_in,)  or (1, d_in)
    returns (B, d_in)
    """
    B, d_in = x.shape
    d_code = w_enc.shape[1]

    x_item = jnp.dtype(x.dtype).itemsize
    w_item = jnp.dtype(w_enc.dtype).itemsize
    sub = 8 if x_item >= 4 else 16          # sublane multiple (f32: 8, bf16: 16)

    # Fold the encoder bias into a combined decoder bias (kept in f32):
    #   (x@We + be)@Wd + bd  ==  (x@We)@Wd + (be@Wd + bd)
    b_comb = (jnp.dot(jnp.reshape(b_enc, (1, d_code)).astype(jnp.float32),
                      w_dec.astype(jnp.float32),
                      precision=jax.lax.Precision.HIGHEST)
              + jnp.reshape(b_dec, (1, d_in)).astype(jnp.float32))

    # Sub-f32 weights -> cache `code` in the weight dtype (MXU fast path);
    # f32 weights -> keep f32 (no pointless down-cast work on v5e's VPU).
    code_dtype = w_dec.dtype if w_item < 4 else jnp.float32
    code_item = jnp.dtype(code_dtype).itemsize

    # ---- per-generation VMEM limit / budget --------------------------------
    try:
        vmem_cap = int(pltpu.get_tpu_info().vmem_capacity_bytes)
    except Exception:
        vmem_cap = 64 * 1024 * 1024          # conservative (v7x per-TC)
    vmem_limit = min(int(vmem_cap * 0.75), 100 * 1024 * 1024)
    budget = int(vmem_limit * 0.8)           # headroom for compiler scratch

    B_sub = _round_up(B, sub)

    def pick_tb(tn):
        """Largest legal batch tile for decoder-output tile width `tn`."""
        # Weights / bias are double-buffered by the pipeliner even though
        # their block index may never change.
        fixed = 2 * w_item * (d_in * d_code + d_code * tn) + 2 * 4 * tn
        per_row = (2 * d_in * x_item            # x tile (double-buffered)
                   + 2 * tn * x_item            # out tile (double-buffered)
                   + d_code * code_item         # cached code scratch
                   + 4 * (d_code + tn))         # f32 matmul results
        avail = budget - fixed
        if avail < sub * per_row:
            return 0
        tb_cap = (avail // per_row) // sub * sub
        # Aim for ~8 batch tiles but never shrink below 256 rows (per-step
        # overhead); always keep >= 2 tiles so both v7x TensorCores engage.
        desired = _round_up(pl.cdiv(B_sub, 8), sub)
        tb = min(tb_cap, 1024, B_sub, max(256, desired))
        if B_sub >= 2 * sub:
            tb = min(tb, _round_up(pl.cdiv(B_sub, 2), sub))
        return tb

    # ---- pick tiling: weights-resident if they fit, else tile decoder dim --
    TN, TB = d_in, pick_tb(d_in)
    if TB < min(128, B_sub):                 # weights crowd out the batch tile
        best_tn, best_tb = TN, TB
        for tn in (1024, 512, 256, 128):
            if tn < d_in:                    # tn must be a 128-multiple <= d_in
                tb = pick_tb(tn)
                if tb > best_tb:
                    best_tn, best_tb = tn, tb
        TN, TB = best_tn, best_tb

    if TB < sub:
        # TODO(synk): weights larger than VMEM need a contraction-tiled
        # (K-split, f32-accumulator) kernel; fall back to plain XLA here.
        code = jnp.dot(x, w_enc, preferred_element_type=jnp.float32) \
            + jnp.reshape(b_enc, (1, d_code))
        out = jnp.dot(code.astype(code_dtype), w_dec,
                      preferred_element_type=jnp.float32) \
            + jnp.reshape(b_dec, (1, d_in))
        return out.astype(x.dtype)

    # Tiny batch pad only up to the sublane multiple (usually a no-op).
    x_in = x if B_sub == B else jnp.pad(x, ((0, B_sub - B), (0, 0)))

    nb = pl.cdiv(B_sub, TB)
    nj = pl.cdiv(d_in, TN)

    # Advisory cost from logical (unpadded) dims.
    cost = pl.CostEstimate(
        flops=4 * B * d_in * d_code,
        transcendentals=0,
        bytes_accessed=(x_item * 2 * B * d_in          # x in, out
                        + w_item * 2 * d_in * d_code   # weights
                        + 4 * d_in))                   # combined bias

    out_p = pl.pallas_call(
        _linear_ae_kernel,
        out_shape=jax.ShapeDtypeStruct((B_sub, d_in), x.dtype),
        grid_spec=pltpu.PrefetchScalarGridSpec(
            num_scalar_prefetch=0,
            grid=(nb, nj),
            in_specs=[
                pl.BlockSpec((TB, d_in), lambda i, j: (i, 0)),      # x: streamed over i
                pl.BlockSpec((d_in, d_code), lambda i, j: (0, 0)),  # w_enc: resident
                pl.BlockSpec((d_code, TN), lambda i, j: (0, j)),    # w_dec: resident / j-tiled
                pl.BlockSpec((1, TN), lambda i, j: (0, j)),         # b_comb (f32)
            ],
            out_specs=pl.BlockSpec((TB, TN), lambda i, j: (i, j)),
            scratch_shapes=[pltpu.VMEM((TB, d_code), code_dtype)],  # cached code
        ),
        compiler_params=pltpu.CompilerParams(
            dimension_semantics=("parallel", "arbitrary"),   # batch tiles split across TCs
            vmem_limit_bytes=vmem_limit),
        cost_estimate=cost,
    )(x_in, w_enc, w_dec, b_comb)

    return out_p if B_sub == B else out_p[:B]


if __name__ == "__main__":
    key = jax.random.PRNGKey(0)

    # --- small test: shapes implied by the module's forward ------------------
    B, d_in, d_code = 8, 32, 8
    k_x, k_we, k_be, k_wd, k_bd, k2 = jax.random.split(key, 6)

    x = jax.random.normal(k_x, (B, d_in), dtype=jnp.float32)
    s_enc = 1.0 / jnp.sqrt(d_in)
    w_enc = jax.random.uniform(k_we, (d_in, d_code), jnp.float32, -s_enc, s_enc)
    b_enc = jax.random.uniform(k_be, (d_code,), jnp.float32, -s_enc, s_enc)
    s_dec = 1.0 / jnp.sqrt(d_code)
    w_dec = jax.random.uniform(k_wd, (d_code, d_in), jnp.float32, -s_dec, s_dec)
    b_dec = jax.random.uniform(k_bd, (d_in,), jnp.float32, -s_dec, s_dec)

    out = jax.block_until_ready(linear_ae(x, w_enc, b_enc, w_dec, b_dec))
    ref = (x @ w_enc + b_enc) @ w_dec + b_dec
    assert out.shape == (B, d_in)
    assert jnp.allclose(out, ref, atol=1e-4, rtol=1e-4), "small-case mismatch"

    # --- larger test: multi-tile grid, uneven batch, unaligned feature dims --
    B2, d_in2, d_code2 = 700, 200, 48
    k_x2, k_we2, k_be2, k_wd2, k_bd2 = jax.random.split(k2, 5)
    x2 = jax.random.normal(k_x2, (B2, d_in2), dtype=jnp.float32)
    s_e2 = 1.0 / jnp.sqrt(d_in2)
    w_e2 = jax.random.uniform(k_we2, (d_in2, d_code2), jnp.float32, -s_e2, s_e2)
    b_e2 = jax.random.uniform(k_be2, (d_code2,), jnp.float32, -s_e2, s_e2)
    s_d2 = 1.0 / jnp.sqrt(d_code2)
    w_d2 = jax.random.uniform(k_wd2, (d_code2, d_in2), jnp.float32, -s_d2, s_d2)
    b_d2 = jax.random.uniform(k_bd2, (d_in2,), jnp.float32, -s_d2, s_d2)

    out2 = jax.block_until_ready(linear_ae(x2, w_e2, b_e2, w_d2, b_d2))
    hp = jax.lax.Precision.HIGHEST
    code2 = jnp.dot(x2, w_e2, precision=hp) + b_e2
    ref2 = jnp.dot(code2, w_d2, precision=hp) + b_d2
    assert out2.shape == (B2, d_in2)
    assert jnp.allclose(out2, ref2, atol=2e-3, rtol=2e-3), "tiled-case mismatch"

    print("KERNEL_OK")
</pallas_src>

<mosaic_0001>
module attributes {stable_mosaic.version = 11 : i64} {
  func.func @_linear_ae_kernel(%arg0: i32, %arg1: i32, %arg2: memref<8x32xf32, #tpu.memory_space<vmem>>, %arg3: memref<32x8xf32, #tpu.memory_space<vmem>>, %arg4: memref<8x32xf32, #tpu.memory_space<vmem>>, %arg5: memref<1x32xf32, #tpu.memory_space<vmem>>, %arg6: memref<8x32xf32, #tpu.memory_space<vmem>>, %arg7: memref<8x8xf32, #tpu.memory_space<vmem>>) attributes {dimension_semantics = [#tpu.dimension_semantics<parallel>, #tpu.dimension_semantics<arbitrary>], iteration_bounds = array<i64: 1, 1>, scalar_prefetch = 0 : i64, scratch_operands = 1 : i64, tpu.core_type = #tpu.core_type<tc>, window_params = [{transform_indices = @transform_0, window_bounds = array<i64: 8, 32>}, {pipeline_mode = #tpu.pipeline_mode<synchronous>, transform_indices = @transform_1, window_bounds = array<i64: 32, 8>}, {transform_indices = @transform_2, window_bounds = array<i64: 8, 32>}, {transform_indices = @transform_3, window_bounds = array<i64: 1, 32>}, {transform_indices = @transform_4, window_bounds = array<i64: 8, 32>}]} {
    %c0_i32 = arith.constant 0 : i32
    %0 = arith.cmpi eq, %arg1, %c0_i32 : i32
    %1 = arith.extui %0 : i1 to i32
    %c0_i32_0 = arith.constant 0 : i32
    %2 = arith.cmpi ne, %1, %c0_i32_0 : i32
    scf.if %2 {
      %c0_8 = arith.constant 0 : index
      %c0_9 = arith.constant 0 : index
      %10 = vector.load %arg2[%c0_8, %c0_9] : memref<8x32xf32, #tpu.memory_space<vmem>>, vector<8x32xf32>
      %c0_10 = arith.constant 0 : index
      %c0_11 = arith.constant 0 : index
      %11 = vector.load %arg3[%c0_10, %c0_11] : memref<32x8xf32, #tpu.memory_space<vmem>>, vector<32x8xf32>
      %cst_12 = arith.constant dense<0.000000e+00> : vector<8x8xf32>
      %12 = tpu.matmul %10, %11, %cst_12 {dimension_numbers = #tpu.dot_dimension_numbers<[1], [0], [0], [1], [0, 0, 1, 1], [], []>} : vector<8x32xf32>, vector<32x8xf32>, vector<8x8xf32> -> vector<8x8xf32>
      %c0_13 = arith.constant 0 : index
      %c0_14 = arith.constant 0 : index
      %13 = vector.load %arg7[%c0_13, %c0_14] : memref<8x8xf32, #tpu.memory_space<vmem>>, vector<8x8xf32>
      tpu.vector_store %arg7[%c0_13, %c0_14], %12 {strides = array<i32>} : memref<8x8xf32, #tpu.memory_space<vmem>>, vector<8x8xf32>,
    } else {
    }
    %c0 = arith.constant 0 : index
    %c0_1 = arith.constant 0 : index
    %3 = vector.load %arg7[%c0, %c0_1] : memref<8x8xf32, #tpu.memory_space<vmem>>, vector<8x8xf32>
    %c0_2 = arith.constant 0 : index
    %c0_3 = arith.constant 0 : index
    %4 = vector.load %arg4[%c0_2, %c0_3] : memref<8x32xf32, #tpu.memory_space<vmem>>, vector<8x32xf32>
    %cst = arith.constant dense<0.000000e+00> : vector<8x32xf32>
    %5 = tpu.matmul %3, %4, %cst {dimension_numbers = #tpu.dot_dimension_numbers<[1], [0], [0], [1], [0, 0, 1, 1], [], []>} : vector<8x8xf32>, vector<8x32xf32>, vector<8x32xf32> -> vector<8x32xf32>
    %c0_4 = arith.constant 0 : index
    %c0_5 = arith.constant 0 : index
    %6 = vector.load %arg5[%c0_4, %c0_5] : memref<1x32xf32, #tpu.memory_space<vmem>>, vector<1x32xf32>
    %7 = vector.broadcast %6 : vector<1x32xf32> to vector<8x32xf32>
    %8 = arith.addf %5, %7 : vector<8x32xf32>
    %c0_6 = arith.constant 0 : index
    %c0_7 = arith.constant 0 : index
    %9 = vector.load %arg6[%c0_6, %c0_7] : memref<8x32xf32, #tpu.memory_space<vmem>>, vector<8x32xf32>
    tpu.vector_store %arg6[%c0_6, %c0_7], %8 {strides = array<i32>} : memref<8x32xf32, #tpu.memory_space<vmem>>, vector<8x32xf32>,
    return
  }
  func.func @transform_0(%arg0: i32, %arg1: i32) -> (i32, i32) {
    %c0_i32 = arith.constant 0 : i32
    %c0_i32_0 = arith.constant 0 : i32
    return %arg0, %c0_i32 : i32, i32
  }
  func.func @transform_1(%arg0: i32, %arg1: i32) -> (i32, i32) {
    %c0_i32 = arith.constant 0 : i32
    %c0_i32_0 = arith.constant 0 : i32
    %c0_i32_1 = arith.constant 0 : i32
    return %c0_i32, %c0_i32_0 : i32, i32
  }
  func.func @transform_2(%arg0: i32, %arg1: i32) -> (i32, i32) {
    %c0_i32 = arith.constant 0 : i32
    %c0_i32_0 = arith.constant 0 : i32
    return %c0_i32, %arg1 : i32, i32
  }
  func.func @transform_3(%arg0: i32, %arg1: i32) -> (i32, i32) {
    %c0_i32 = arith.constant 0 : i32
    %c0_i32_0 = arith.constant 0 : i32
    return %c0_i32, %arg1 : i32, i32
  }
  func.func @transform_4(%arg0: i32, %arg1: i32) -> (i32, i32) {
    %c0_i32 = arith.constant 0 : i32
    return %arg0, %arg1 : i32, i32
  }
}

</mosaic_0001>

<llo_original>
// kernel: tpu_custom_call.1
$region0: #{tpu_custom_call.1}
  #allocation0 [shape = 'u32[]', space=smem, size = 0x4, offset = 0x4, fixed_abs, tag = 'smem constant byte address 0x4 - core index']
  #allocation1 [shape = 'u32[144,128]{1,0:T(1,128)}', space=vmem, size = 0x12000, scoped, tag = 'internal scratch']
  #allocation2 [shape = 'f32[8,8]{1,0:T(8,128)}', space=vmem, size = 0x1000, scoped, tag = 'scratch operand']
  %s0 = inlined_call_operand.vmem [shape: f32[8,32], index: 0, kind: input, shape index: {}]
  %s1 = inlined_call_operand.vmem [shape: f32[32,8], index: 1, kind: input, shape index: {}]
  %s2 = inlined_call_operand.vmem [shape: f32[8,32], index: 2, kind: input, shape index: {}]
  %s3 = inlined_call_operand.vmem [shape: f32[1,32], index: 3, kind: input, shape index: {}]
  %s4 = inlined_call_operand.hbm [shape: f32[8,32], index: 4, kind: output, shape index: {}]
  %s5 = sld [smem:[#allocation0]]
  $region30: #{tpu_custom_call.1} parent=0
    _
  %s7 = ssub.s32 1, %s5
  %s8 = scalar_select 0, %s7, %s5
  $region1: #{tpu_custom_call.1} parent=0
    #allocation3 [shape = 'u8[4096]{0}', space=vmem, size = 0x1000, scoped, tag = 'output window, operand 0, single buffered']
    #allocation4 [shape = 's32[1]{0}', space=sflag, size = 0x4, scoped, tag = 'scoped memory for tpu_custom_call.1']
    %9 = vsyncpa [#allocation4], 0
    // Predicated region
    $region2: #{tpu_custom_call.1} parent=1 // pred_check
      _
    $region3: #{tpu_custom_call.1} parent=1 // pred_check_branch
      %11 = sbr.rel (0) target = $region5
    $region4: #{tpu_custom_call.1} parent=1 // pred_region
      _
    $region5: #{tpu_custom_call.1} parent=1 // pred_fallthru
      _
    // Predicated region
    $region6: #{tpu_custom_call.1} parent=1 // pred_check
      _
    $region7: #{tpu_custom_call.1} parent=1 // pred_check_branch
      %13 = sbr.rel (0) target = $region9
    $region8: #{tpu_custom_call.1} parent=1 // pred_region
      _
    $region9: #{tpu_custom_call.1} parent=1 // pred_fallthru
      _
    // Predicated region
    $region10: #{tpu_custom_call.1} parent=1 // pred_check
      _
    $region11: #{tpu_custom_call.1} parent=1 // pred_check_branch
      %15 = sbr.rel (0) target = $region13
    $region12: #{tpu_custom_call.1} parent=1 // pred_region
      _
    $region13: #{tpu_custom_call.1} parent=1 // pred_fallthru
      _
    // Predicated region
    $region14: #{tpu_custom_call.1} parent=1 // pred_check
      _
    $region15: #{tpu_custom_call.1} parent=1 // pred_check_branch
      %17 = sbr.rel (0) target = $region17
    $region16: #{tpu_custom_call.1} parent=1 // pred_region
      _
    $region17: #{tpu_custom_call.1} parent=1 // pred_fallthru
      _
    %p18 = scmp.eq.s32.totalorder 0, 0
    // Predicated region
    $region18: #{tpu_custom_call.1} parent=1 // pred_check
      %p19 = pneg %p18
    $region19: #{tpu_custom_call.1} parent=1 // pred_check_branch
      %21 = sbr.rel (%p19) target = $region21
    $region20: #{tpu_custom_call.1} parent=1 // pred_region
      %v22 = vld [vmem:[%s0] sm:$0xff]
      %v23 = vld [vmem:[%s1] sm:$0xff]
      %v24 = vld [vmem:[%s1 + $0x8] sm:$0xff]
      %v25 = vld [vmem:[%s1 + $0x10] sm:$0xff]
      %v26 = vld [vmem:[%s1 + $0x18] sm:$0xff]
      %vm27 = vcmask 261120
      %v29 = vsel %vm27, %v22, 0
      %31 = vmatprep.subr.mxu0 0.0
      %32 = vmatpush1.msra.mxu0 %v23
      %33 = vmatprep.subr.mxu0 0.0
      %34 = vmatpush1.msra.mxu0 %v24
      %35 = vmatprep.subr.mxu0 0.0
      %36 = vmatpush1.msra.mxu0 %v25
      %37 = vmatprep.subr.mxu0 0.0
      %38 = vmatpush1.msra.mxu0 %v26
      %39 = vmatprep.subr.mxu0 0.0
      %40 = vmatpush1.msra.mxu0 0.0
      %41 = vmatprep.subr.mxu0 0.0
      %42 = vmatpush1.msra.mxu0 0.0
      %43 = vmatprep.subr.mxu0 0.0
      %44 = vmatpush1.msra.mxu0 0.0
      %45 = vmatprep.subr.mxu0 0.0
      %46 = vmatpush1.msra.mxu0 0.0
      %47 = vmatprep.subr.mxu0 0.0
      %48 = vmatpush1.msra.mxu0 0.0
      %49 = vmatprep.subr.mxu0 0.0
      %50 = vmatpush1.msra.mxu0 0.0
      %51 = vmatprep.subr.mxu0 0.0
      %52 = vmatpush1.msra.mxu0 0.0
      %53 = vmatprep.subr.mxu0 0.0
      %54 = vmatpush1.msra.mxu0 0.0
      %55 = vmatprep.subr.mxu0 0.0
      %56 = vmatpush1.msra.mxu0 0.0
      %57 = vmatprep.subr.mxu0 0.0
      %58 = vmatpush1.msra.mxu0 0.0
      %59 = vmatprep.subr.mxu0 0.0
      %60 = vmatpush1.msra.mxu0 0.0
      %61 = vmatprep.subr.mxu0 0.0
      %62 = vmatpush1.msra.mxu0 0.0
      %63 = vmatprep.subr.mxu0 0.0
      %64 = vmatpush1.msra.mxu0 0.0
      %65 = vmatprep.subr.mxu0 0.0
      %66 = vmatpush1.msra.mxu0 0.0
      %67 = vmatprep.subr.mxu0 0.0
      %68 = vmatpush1.msra.mxu0 0.0
      %69 = vmatprep.subr.mxu0 0.0
      %70 = vmatpush1.msra.mxu0 0.0
      %71 = vmatprep.subr.mxu0 0.0
      %72 = vmatpush1.msra.mxu0 0.0
      %73 = vmatprep.subr.mxu0 0.0
      %74 = vmatpush1.msra.mxu0 0.0
      %75 = vmatprep.subr.mxu0 0.0
      %76 = vmatpush1.msra.mxu0 0.0
      %77 = vmatprep.subr.mxu0 0.0
      %78 = vmatpush1.msra.mxu0 0.0
      %79 = vmatprep.subr.mxu0 0.0
      %80 = vmatpush1.msra.mxu0 0.0
      %81 = vmatprep.subr.mxu0 0.0
      %82 = vmatpush1.msra.mxu0 0.0
      %83 = vmatprep.subr.mxu0 0.0
      %84 = vmatpush1.msra.mxu0 0.0
      %85 = vmatprep.subr.mxu0 0.0
      %86 = vmatpush1.msra.mxu0 0.0
      %87 = vmatprep.subr.mxu0 0.0
      %88 = vmatpush1.msra.mxu0 0.0
      %89 = vmatprep.subr.mxu0 0.0
      %90 = vmatpush1.msra.mxu0 0.0
      %91 = vmatprep.subr.mxu0 0.0
      %92 = vmatpush1.msra.mxu0 0.0
      %93 = vmatprep.subr.mxu0 0.0
      %94 = vmatpush1.msra.mxu0 0.0
      %95 = vmatprep.mubr.f32.mxu0 0.0
      %96 = vmatmul.mubr.f32.gmra.mrb[0].mxu0 %v29
      %v97 = vpop.f32.mrb[0].mxu0
      %v98 = vadd.f32 0.0, %v97
      %v99 = vpop.f32.mrb[0].mxu0
      %100 = vdwg.mxu0
      %vm101 = vcmask 64512
      %102 = vst.msk [vmem:[#allocation2] sm:$0xff] %vm101, %v98
    $region21: #{tpu_custom_call.1} parent=1 // pred_fallthru
      _
    %v103 = vld [vmem:[#allocation2] sm:$0xff]
    %v104 = vld [vmem:[%s2] sm:$0xff]
    %v105 = vld [vmem:[%s3] sm:$0x1]
    %v107 = vlaneseq
    %v108 = vshrl.u32 %v107, 7
    %v109 = vsub.s32 0, %v108
    %v110 = vrot.slane %v105, %v109
    %vm112 = vcmask 64512
    %v114 = vsel %vm112, %v103, 0
    %116 = vmatprep.subr.mxu0 0.0
    %117 = vmatpush1.msra.mxu0 %v104
    %118 = vmatprep.subr.mxu0 0.0
    %119 = vmatpush1.msra.mxu0 0.0
    %120 = vmatprep.subr.mxu0 0.0
    %121 = vmatpush1.msra.mxu0 0.0
    %122 = vmatprep.subr.mxu0 0.0
    %123 = vmatpush1.msra.mxu0 0.0
    %124 = vmatprep.subr.mxu0 0.0
    %125 = vmatpush1.msra.mxu0 0.0
    %126 = vmatprep.subr.mxu0 0.0
    %127 = vmatpush1.msra.mxu0 0.0
    %128 = vmatprep.subr.mxu0 0.0
    %129 = vmatpush1.msra.mxu0 0.0
    %130 = vmatprep.subr.mxu0 0.0
    %131 = vmatpush1.msra.mxu0 0.0
    %132 = vmatprep.subr.mxu0 0.0
    %133 = vmatpush1.msra.mxu0 0.0
    %134 = vmatprep.subr.mxu0 0.0
    %135 = vmatpush1.msra.mxu0 0.0
    %136 = vmatprep.subr.mxu0 0.0
    %137 = vmatpush1.msra.mxu0 0.0
    %138 = vmatprep.subr.mxu0 0.0
    %139 = vmatpush1.msra.mxu0 0.0
    %140 = vmatprep.subr.mxu0 0.0
    %141 = vmatpush1.msra.mxu0 0.0
    %142 = vmatprep.subr.mxu0 0.0
    %143 = vmatpush1.msra.mxu0 0.0
    %144 = vmatprep.subr.mxu0 0.0
    %145 = vmatpush1.msra.mxu0 0.0
    %146 = vmatprep.subr.mxu0 0.0
    %147 = vmatpush1.msra.mxu0 0.0
    %148 = vmatprep.subr.mxu0 0.0
    %149 = vmatpush1.msra.mxu0 0.0
    %150 = vmatprep.subr.mxu0 0.0
    %151 = vmatpush1.msra.mxu0 0.0
    %152 = vmatprep.subr.mxu0 0.0
    %153 = vmatpush1.msra.mxu0 0.0
    %154 = vmatprep.subr.mxu0 0.0
    %155 = vmatpush1.msra.mxu0 0.0
    %156 = vmatprep.subr.mxu0 0.0
    %157 = vmatpush1.msra.mxu0 0.0
    %158 = vmatprep.subr.mxu0 0.0
    %159 = vmatpush1.msra.mxu0 0.0
    %160 = vmatprep.subr.mxu0 0.0
    %161 = vmatpush1.msra.mxu0 0.0
    %162 = vmatprep.subr.mxu0 0.0
    %163 = vmatpush1.msra.mxu0 0.0
    %164 = vmatprep.subr.mxu0 0.0
    %165 = vmatpush1.msra.mxu0 0.0
    %166 = vmatprep.subr.mxu0 0.0
    %167 = vmatpush1.msra.mxu0 0.0
    %168 = vmatprep.subr.mxu0 0.0
    %169 = vmatpush1.msra.mxu0 0.0
    %170 = vmatprep.subr.mxu0 0.0
    %171 = vmatpush1.msra.mxu0 0.0
    %172 = vmatprep.subr.mxu0 0.0
    %173 = vmatpush1.msra.mxu0 0.0
    %174 = vmatprep.subr.mxu0 0.0
    %175 = vmatpush1.msra.mxu0 0.0
    %176 = vmatprep.subr.mxu0 0.0
    %177 = vmatpush1.msra.mxu0 0.0
    %178 = vmatprep.subr.mxu0 0.0
    %179 = vmatpush1.msra.mxu0 0.0
    %180 = vmatprep.mubr.f32.mxu0 0.0
    %181 = vmatmul.mubr.f32.gmra.mrb[0].mxu0 %v114
    %v182 = vpop.f32.mrb[0].mxu0
    %v183 = vadd.f32 %v110, %v182
    %v184 = vpop.f32.mrb[0].mxu0
    %185 = vdwg.mxu0
    %vm186 = vcmask 261120
    %187 = vst.msk [vmem:[#allocation3] sm:$0xff] %vm186, %v183
    // Predicated region
    $region22: #{tpu_custom_call.1} parent=1 // pred_check
      _
    $region23: #{tpu_custom_call.1} parent=1 // pred_check_branch
      %189 = sbr.rel (0) target = $region25
    $region24: #{tpu_custom_call.1} parent=1 // pred_region
      %s191 = ssub.s32 128, 128
      %192 = vsyncadd [#allocation4], %s191
      %s194 = sshll.u32 [#allocation3], 4
      %s195 = int_to_ptr.vmem [resolvable:$true] %s194
      %197 = dma.vmem_to_hbm [thread:$0]  %s195, 128, %s4, [#allocation4]
    $region25: #{tpu_custom_call.1} parent=1 // pred_fallthru
      _
    // Predicated region
    $region26: #{tpu_custom_call.1} parent=1 // pred_check
      _
    $region27: #{tpu_custom_call.1} parent=1 // pred_check_branch
      %199 = sbr.rel (0) target = $region29
    $region28: #{tpu_custom_call.1} parent=1 // pred_region
      %200 = dma.done [#allocation4], 128
    $region29: #{tpu_custom_call.1} parent=1 // pred_fallthru
      _
    %201 = vsyncpa [#allocation4], 1

</llo_original>
